<compile_context>
chip_gen: v5e
topology: v5e:2x2
jax: 0.10.0
libtpu: 0.0.40
codegen_flags: <defaults>
</compile_context>

<pallas_src>
import functools

import jax
import jax.numpy as jnp
from jax.experimental import pallas as pl
from jax.experimental.pallas import tpu as pltpu


VMEM_SPEC = pl.BlockSpec(memory_space=pltpu.MemorySpace.VMEM)
VMEM_LIMIT = 32 * 1024 * 1024  # safe on v5e/v6e (128 MiB) and v7x (64 MiB)


# ---------------------------------------------------------------------------
# Patch embedding kernel: Conv2d(kernel=stride=patch) == matmul over flattened patches
# Row-tiled grid so the DMA of tile i+1 overlaps compute of tile i.
# ---------------------------------------------------------------------------
def _patch_embed_kernel(p_ref, w_ref, b_ref, o_ref):
    p_bf = p_ref[...].astype(jnp.bfloat16)              # bf16 MXU operand
    o_ref[...] = (
        jnp.dot(p_bf, w_ref[...], preferred_element_type=jnp.float32) + b_ref[...]
    )


def patch_embed(patches, w_bf, b, *, row_tile=256):
    rows, K = patches.shape
    D = w_bf.shape[1]
    rows_p = ((rows + row_tile - 1) // row_tile) * row_tile
    if rows_p != rows:
        patches = jnp.pad(patches, ((0, rows_p - rows), (0, 0)))
    out = pl.pallas_call(
        _patch_embed_kernel,
        out_shape=jax.ShapeDtypeStruct((rows_p, D), jnp.float32),
        grid_spec=pltpu.PrefetchScalarGridSpec(
            num_scalar_prefetch=0,
            grid=(rows_p // row_tile,),
            in_specs=[
                pl.BlockSpec((row_tile, K), lambda i: (i, 0)),
                pl.BlockSpec((K, D), lambda i: (0, 0)),     # weight resident
                pl.BlockSpec((1, D), lambda i: (0, 0)),     # bias resident
            ],
            out_specs=pl.BlockSpec((row_tile, D), lambda i: (i, 0)),
        ),
        compiler_params=pltpu.CompilerParams(
            dimension_semantics=("parallel",),
            vmem_limit_bytes=VMEM_LIMIT,
        ),
    )(patches, w_bf, b)
    return out[:rows]


# ---------------------------------------------------------------------------
# Transformer block kernel (pre-norm attention + MLP, with residuals).
# Grid over batch: one sample's full sequence per grid step (attention needs
# the whole sequence); weights untiled (constant index_map -> no re-DMA).
# ---------------------------------------------------------------------------
def _block_kernel(
    x_ref, g1_ref, be1_ref, wqkv_ref, bqkv_ref, wp_ref, bp_ref,
    g2_ref, be2_ref, w1_ref, b1_ref, w2_ref, b2_ref, o_ref, *, n_heads,
):
    eps = 1e-6
    x = x_ref[...]                                       # (1, N, D) f32
    _, N, D = x.shape
    H = n_heads
    hd = D // H
    scale = float(hd) ** -0.5

    # ---- LayerNorm 1 (f32 stats, biased variance, eps=1e-6 like the module) ----
    mu = jnp.mean(x, axis=-1, keepdims=True)
    var = jnp.mean((x - mu) ** 2, axis=-1, keepdims=True)
    h = (x - mu) * jax.lax.rsqrt(var + eps) * g1_ref[...] + be1_ref[...]

    # ---- QKV projection (bf16 MXU operands, f32 accumulation) ----
    h2d = h.reshape(N, D).astype(jnp.bfloat16)
    qkv = (
        jnp.dot(h2d, wqkv_ref[...], preferred_element_type=jnp.float32)
        + bqkv_ref[...]
    )                                                    # (N, 3D) f32

    # ---- fused multi-head attention (no per-head python loop / concat) ----
    q = jnp.transpose(qkv[:, 0 * D:1 * D].reshape(N, H, hd), (1, 0, 2))  # (H,N,hd)
    k = jnp.transpose(qkv[:, 1 * D:2 * D].reshape(N, H, hd), (1, 0, 2))
    v = jnp.transpose(qkv[:, 2 * D:3 * D].reshape(N, H, hd), (1, 0, 2))

    scores = jnp.einsum(
        "hqd,hkd->hqk", q.astype(jnp.bfloat16), k.astype(jnp.bfloat16),
        preferred_element_type=jnp.float32,
    ) * scale                                            # (H, N, N) f32

    m = jnp.max(scores, axis=-1, keepdims=True)          # softmax in f32
    p = jnp.exp(scores - m)
    denom = jnp.sum(p, axis=-1, keepdims=True)
    attn = p * pl.reciprocal(denom, approx=True)         # EUP instead of VPU divide

    ctx = jnp.einsum(
        "hqk,hkd->hqd", attn.astype(jnp.bfloat16), v.astype(jnp.bfloat16),
        preferred_element_type=jnp.float32,
    )                                                    # (H, N, hd)
    ctx = jnp.transpose(ctx, (1, 0, 2)).reshape(N, D)    # == transpose(1,2).flatten(2)

    proj = (
        jnp.dot(ctx.astype(jnp.bfloat16), wp_ref[...],
                preferred_element_type=jnp.float32)
        + bp_ref[...]
    )
    x1 = x + proj.reshape(1, N, D)                       # residual 1 (f32)

    # ---- LayerNorm 2 + MLP (exact erf GELU, like torch nn.GELU) ----
    mu2 = jnp.mean(x1, axis=-1, keepdims=True)
    var2 = jnp.mean((x1 - mu2) ** 2, axis=-1, keepdims=True)
    g = (x1 - mu2) * jax.lax.rsqrt(var2 + eps) * g2_ref[...] + be2_ref[...]

    hm = (
        jnp.dot(g.reshape(N, D).astype(jnp.bfloat16), w1_ref[...],
                preferred_element_type=jnp.float32)
        + b1_ref[...]
    )
    hm = jax.nn.gelu(hm, approximate=False)
    hm = (
        jnp.dot(hm.astype(jnp.bfloat16), w2_ref[...],
                preferred_element_type=jnp.float32)
        + b2_ref[...]
    )
    o_ref[...] = x1 + hm.reshape(1, N, D)                # residual 2 (f32)


def transformer_block(x, p, n_heads):
    B, N, D = x.shape
    hidden = p["w_fc1"].shape[1]
    kernel = functools.partial(_block_kernel, n_heads=n_heads)
    args = (
        x,
        p["ln1_g"], p["ln1_b"],
        p["w_qkv"], p["b_qkv"],
        p["w_proj"], p["b_proj"],
        p["ln2_g"], p["ln2_b"],
        p["w_fc1"], p["b_fc1"],
        p["w_fc2"], p["b_fc2"],
    )

    def full_spec(a):
        nd = a.ndim
        return pl.BlockSpec(a.shape, lambda b, _nd=nd: (0,) * _nd)

    in_specs = [pl.BlockSpec((1, N, D), lambda b: (b, 0, 0))] + [
        full_spec(a) for a in args[1:]
    ]
    out_specs = pl.BlockSpec((1, N, D), lambda b: (b, 0, 0))

    flops = 2 * B * N * (4 * D * D + 2 * D * hidden + 2 * N * D)
    transcendentals = B * N * (n_heads * N + hidden)
    bytes_accessed = 2 * B * N * D * 4 + sum(
        int(a.size) * a.dtype.itemsize for a in args[1:]
    )

    return pl.pallas_call(
        kernel,
        out_shape=jax.ShapeDtypeStruct(x.shape, jnp.float32),
        grid_spec=pltpu.PrefetchScalarGridSpec(
            num_scalar_prefetch=0,
            grid=(B,),
            in_specs=in_specs,
            out_specs=out_specs,
        ),
        compiler_params=pltpu.CompilerParams(
            dimension_semantics=("parallel",),
            vmem_limit_bytes=VMEM_LIMIT,
        ),
        cost_estimate=pl.CostEstimate(
            flops=flops,
            transcendentals=transcendentals,
            bytes_accessed=bytes_accessed,
        ),
    )(*args)


# ---------------------------------------------------------------------------
# Final LayerNorm on CLS token + classification head
# ---------------------------------------------------------------------------
def _head_kernel(x_ref, g_ref, b_ref, w_ref, bh_ref, o_ref):
    eps = 1e-6
    x = x_ref[...]                                       # (B, D) f32
    mu = jnp.mean(x, axis=-1, keepdims=True)
    var = jnp.mean((x - mu) ** 2, axis=-1, keepdims=True)
    h = (x - mu) * jax.lax.rsqrt(var + eps) * g_ref[...] + b_ref[...]
    o_ref[...] = (
        jnp.dot(h.astype(jnp.bfloat16), w_ref[...],
                preferred_element_type=jnp.float32)
        + bh_ref[...]
    )


def head(cls_tok, g, b, w_bf, bh):
    return pl.pallas_call(
        _head_kernel,
        out_shape=jax.ShapeDtypeStruct((cls_tok.shape[0], w_bf.shape[1]), jnp.float32),
        in_specs=[VMEM_SPEC] * 5,
        out_specs=VMEM_SPEC,
        compiler_params=pltpu.CompilerParams(vmem_limit_bytes=VMEM_LIMIT),
    )(cls_tok, g, b, w_bf, bh)


# ---------------------------------------------------------------------------
# Parameter init (deterministic, synthetic) and forward glue
# ---------------------------------------------------------------------------
def init_params(key, cfg):
    C, ps, D = cfg["in_chans"], cfg["patch_size"], cfg["embed_dim"]
    n_patches = (cfg["img_size"] // ps) ** 2
    hidden = int(D * cfg["mlp_ratio"])
    nC = cfg["n_classes"]

    keys = iter(jax.random.split(key, 16 + 16 * cfg["depth"]))

    def nrm(shape, s=0.02, dtype=jnp.float32):
        return (s * jax.random.normal(next(keys), shape)).astype(dtype)

    bf = jnp.bfloat16
    params = {
        # conv weight (D, C, ps, ps) flattened to (C*ps*ps, D) for the matmul kernel
        "pe_w": nrm((C * ps * ps, D), dtype=bf),
        "pe_b": nrm((1, D)),
        "cls_token": nrm((1, 1, D)),
        "pos_embed": nrm((1, 1 + n_patches, D)),
        "norm_g": jnp.ones((1, D), jnp.float32),
        "norm_b": jnp.zeros((1, D), jnp.float32),
        "head_w": nrm((D, nC), dtype=bf),
        "head_b": nrm((1, nC)),
        "blocks": [],
    }
    for _ in range(cfg["depth"]):
        params["blocks"].append({
            "ln1_g": jnp.ones((1, 1, D), jnp.float32),
            "ln1_b": jnp.zeros((1, 1, D), jnp.float32),
            "w_qkv": nrm((D, 3 * D), dtype=bf),
            "b_qkv": nrm((1, 3 * D)),
            "w_proj": nrm((D, D), dtype=bf),
            "b_proj": nrm((1, D)),
            "ln2_g": jnp.ones((1, 1, D), jnp.float32),
            "ln2_b": jnp.zeros((1, 1, D), jnp.float32),
            "w_fc1": nrm((D, hidden), dtype=bf),
            "b_fc1": nrm((1, hidden)),
            "w_fc2": nrm((hidden, D), dtype=bf),
            "b_fc2": nrm((1, D)),
        })
    return params


def vit_forward(x_img, params, cfg):
    B, C, Hh, Ww = x_img.shape
    ps, D = cfg["patch_size"], cfg["embed_dim"]
    nh, nw = Hh // ps, Ww // ps

    # Patchify (glue): NCHW -> (B*nP, C*ps*ps), flatten order (c, i, j) matching conv weights
    patches = (
        x_img.reshape(B, C, nh, ps, nw, ps)
        .transpose(0, 2, 4, 1, 3, 5)
        .reshape(B * nh * nw, C * ps * ps)
        .astype(jnp.float32)
    )
    emb = patch_embed(patches, params["pe_w"], params["pe_b"]).reshape(B, nh * nw, D)

    cls = jnp.broadcast_to(params["cls_token"], (B, 1, D))
    x = jnp.concatenate([cls, emb], axis=1) + params["pos_embed"]   # (B, 1+nP, D)

    # TODO(synk): cross-pallas_call weight prefetch (P10) to hide each block's
    # weight DMA behind the previous block's compute.
    for blk in params["blocks"]:
        x = transformer_block(x, blk, cfg["n_heads"])

    # final LayerNorm acts per-token, so applying it to the CLS row only is equivalent
    cls_final = x[:, 0]                                             # (B, D)
    logits = head(cls_final, params["norm_g"], params["norm_b"],
                  params["head_w"], params["head_b"])
    return logits


if __name__ == "__main__":
    cfg = dict(
        img_size=16,
        patch_size=8,
        in_chans=3,
        n_classes=10,
        embed_dim=32,
        depth=2,
        n_heads=4,
        mlp_ratio=4.0,
    )
    key = jax.random.PRNGKey(0)
    k_param, k_x = jax.random.split(key)
    params = init_params(k_param, cfg)

    x = jax.random.normal(k_x, (2, cfg["in_chans"], cfg["img_size"], cfg["img_size"]),
                          dtype=jnp.float32)

    logits = vit_forward(x, params, cfg)
    logits = jax.block_until_ready(logits)
    assert logits.shape == (2, cfg["n_classes"])
    assert bool(jnp.all(jnp.isfinite(logits)))
    print("KERNEL_OK")
</pallas_src>

<mosaic_0001>
module attributes {stable_mosaic.version = 11 : i64} {
  func.func @_patch_embed_kernel(%arg0: i32, %arg1: memref<256x192xf32, #tpu.memory_space<vmem>>, %arg2: memref<192x32xbf16, #tpu.memory_space<vmem>>, %arg3: memref<1x32xf32, #tpu.memory_space<vmem>>, %arg4: memref<256x32xf32, #tpu.memory_space<vmem>>) attributes {dimension_semantics = [#tpu.dimension_semantics<parallel>], iteration_bounds = array<i64: 1>, scalar_prefetch = 0 : i64, scratch_operands = 0 : i64, tpu.core_type = #tpu.core_type<tc>, window_params = [{transform_indices = @transform_0, window_bounds = array<i64: 256, 192>}, {pipeline_mode = #tpu.pipeline_mode<synchronous>, transform_indices = @transform_1, window_bounds = array<i64: 192, 32>}, {pipeline_mode = #tpu.pipeline_mode<synchronous>, transform_indices = @transform_2, window_bounds = array<i64: 1, 32>}, {transform_indices = @transform_3, window_bounds = array<i64: 256, 32>}]} {
    %c0 = arith.constant 0 : index
    %c0_0 = arith.constant 0 : index
    %0 = vector.load %arg1[%c0, %c0_0] : memref<256x192xf32, #tpu.memory_space<vmem>>, vector<256x192xf32>
    %1 = arith.truncf %0 : vector<256x192xf32> to vector<256x192xbf16>
    %c0_1 = arith.constant 0 : index
    %c0_2 = arith.constant 0 : index
    %2 = vector.load %arg2[%c0_1, %c0_2] : memref<192x32xbf16, #tpu.memory_space<vmem>>, vector<192x32xbf16>
    %cst = arith.constant dense<0.000000e+00> : vector<256x32xf32>
    %3 = tpu.matmul %1, %2, %cst {dimension_numbers = #tpu.dot_dimension_numbers<[1], [0], [0], [1], [0, 0, 1, 1], [], []>} : vector<256x192xbf16>, vector<192x32xbf16>, vector<256x32xf32> -> vector<256x32xf32>
    %c0_3 = arith.constant 0 : index
    %c0_4 = arith.constant 0 : index
    %4 = vector.load %arg3[%c0_3, %c0_4] : memref<1x32xf32, #tpu.memory_space<vmem>>, vector<1x32xf32>
    %5 = vector.broadcast %4 : vector<1x32xf32> to vector<256x32xf32>
    %6 = arith.addf %3, %5 : vector<256x32xf32>
    %c0_5 = arith.constant 0 : index
    %c0_6 = arith.constant 0 : index
    %7 = vector.load %arg4[%c0_5, %c0_6] : memref<256x32xf32, #tpu.memory_space<vmem>>, vector<256x32xf32>
    tpu.vector_store %arg4[%c0_5, %c0_6], %6 {strides = array<i32>} : memref<256x32xf32, #tpu.memory_space<vmem>>, vector<256x32xf32>,
    return
  }
  func.func @transform_0(%arg0: i32) -> (i32, i32) {
    %c0_i32 = arith.constant 0 : i32
    %c0_i32_0 = arith.constant 0 : i32
    return %arg0, %c0_i32 : i32, i32
  }
  func.func @transform_1(%arg0: i32) -> (i32, i32) {
    %c0_i32 = arith.constant 0 : i32
    %c0_i32_0 = arith.constant 0 : i32
    %c0_i32_1 = arith.constant 0 : i32
    return %c0_i32, %c0_i32_0 : i32, i32
  }
  func.func @transform_2(%arg0: i32) -> (i32, i32) {
    %c0_i32 = arith.constant 0 : i32
    %c0_i32_0 = arith.constant 0 : i32
    %c0_i32_1 = arith.constant 0 : i32
    return %c0_i32, %c0_i32_0 : i32, i32
  }
  func.func @transform_3(%arg0: i32) -> (i32, i32) {
    %c0_i32 = arith.constant 0 : i32
    %c0_i32_0 = arith.constant 0 : i32
    return %arg0, %c0_i32 : i32, i32
  }
}

</mosaic_0001>

<llo_original>
// kernel: tpu_custom_call.1
$region0: #{tpu_custom_call.1}
  #allocation0 [shape = 'u32[]', space=smem, size = 0x4, offset = 0x4, fixed_abs, tag = 'smem constant byte address 0x4 - core index']
  #allocation1 [shape = 'u32[72,128]{1,0:T(1,128)}', space=vmem, size = 0x9000, scoped, tag = 'internal scratch']
  %s0 = inlined_call_operand.vmem [shape: f32[256,192], index: 0, kind: input, shape index: {}]
  %s1 = inlined_call_operand.vmem [shape: bf16[192,32], index: 1, kind: input, shape index: {}]
  %s2 = inlined_call_operand.vmem [shape: f32[1,32], index: 2, kind: input, shape index: {}]
  %s3 = inlined_call_operand.vmem [shape: f32[256,32], index: 3, kind: output, shape index: {}]
  %s4 = sld [smem:[#allocation0]]
  $region22: #{tpu_custom_call.1} parent=0
    _
  %s6 = ssub.s32 1, %s4
  %s7 = scalar_select 0, %s6, %s4
  // Predicated region
  $region2: #{tpu_custom_call.1} parent=0 // pred_check
    _
  $region3: #{tpu_custom_call.1} parent=0 // pred_check_branch
    %9 = sbr.rel (0) target = $region5
  $region4: #{tpu_custom_call.1} parent=0 // pred_region
    _
  $region5: #{tpu_custom_call.1} parent=0 // pred_fallthru
    _
  // Predicated region
  $region6: #{tpu_custom_call.1} parent=0 // pred_check
    _
  $region7: #{tpu_custom_call.1} parent=0 // pred_check_branch
    %11 = sbr.rel (0) target = $region9
  $region8: #{tpu_custom_call.1} parent=0 // pred_region
    _
  $region9: #{tpu_custom_call.1} parent=0 // pred_fallthru
    _
  // Predicated region
  $region10: #{tpu_custom_call.1} parent=0 // pred_check
    _
  $region11: #{tpu_custom_call.1} parent=0 // pred_check_branch
    %13 = sbr.rel (0) target = $region13
  $region12: #{tpu_custom_call.1} parent=0 // pred_region
    _
  $region13: #{tpu_custom_call.1} parent=0 // pred_fallthru
    _
  %v15 = vld [vmem:[%s0] sm:$0xff]
  %v16 = vld [vmem:[%s0 + $0x8] sm:$0xff]
  %v17 = vld [vmem:[%s0 + $0x10] sm:$0xff]
  %v18 = vld [vmem:[%s0 + $0x18] sm:$0xff]
  %v19 = vld [vmem:[%s0 + $0x20] sm:$0xff]
  %v20 = vld [vmem:[%s0 + $0x28] sm:$0xff]
  %v21 = vld [vmem:[%s0 + $0x30] sm:$0xff]
  %v22 = vld [vmem:[%s0 + $0x38] sm:$0xff]
  %v23 = vld [vmem:[%s0 + $0x40] sm:$0xff]
  %v24 = vld [vmem:[%s0 + $0x48] sm:$0xff]
  %v25 = vld [vmem:[%s0 + $0x50] sm:$0xff]
  %v26 = vld [vmem:[%s0 + $0x58] sm:$0xff]
  %v27 = vld [vmem:[%s0 + $0x60] sm:$0xff]
  %v28 = vld [vmem:[%s0 + $0x68] sm:$0xff]
  %v29 = vld [vmem:[%s0 + $0x70] sm:$0xff]
  %v30 = vld [vmem:[%s0 + $0x78] sm:$0xff]
  %v31 = vld [vmem:[%s0 + $0x80] sm:$0xff]
  %v32 = vld [vmem:[%s0 + $0x88] sm:$0xff]
  %v33 = vld [vmem:[%s0 + $0x90] sm:$0xff]
  %v34 = vld [vmem:[%s0 + $0x98] sm:$0xff]
  %v35 = vld [vmem:[%s0 + $0xa0] sm:$0xff]
  %v36 = vld [vmem:[%s0 + $0xa8] sm:$0xff]
  %v37 = vld [vmem:[%s0 + $0xb0] sm:$0xff]
  %v38 = vld [vmem:[%s0 + $0xb8] sm:$0xff]
  %v39 = vld [vmem:[%s0 + $0xc0] sm:$0xff]
  %v40 = vld [vmem:[%s0 + $0xc8] sm:$0xff]
  %v41 = vld [vmem:[%s0 + $0xd0] sm:$0xff]
  %v42 = vld [vmem:[%s0 + $0xd8] sm:$0xff]
  %v43 = vld [vmem:[%s0 + $0xe0] sm:$0xff]
  %v44 = vld [vmem:[%s0 + $0xe8] sm:$0xff]
  %v45 = vld [vmem:[%s0 + $0xf0] sm:$0xff]
  %v46 = vld [vmem:[%s0 + $0xf8] sm:$0xff]
  %v47 = vld [vmem:[%s0 + $0x100] sm:$0xff]
  %v48 = vld [vmem:[%s0 + $0x108] sm:$0xff]
  %v49 = vld [vmem:[%s0 + $0x110] sm:$0xff]
  %v50 = vld [vmem:[%s0 + $0x118] sm:$0xff]
  %v51 = vld [vmem:[%s0 + $0x120] sm:$0xff]
  %v52 = vld [vmem:[%s0 + $0x128] sm:$0xff]
  %v53 = vld [vmem:[%s0 + $0x130] sm:$0xff]
  %v54 = vld [vmem:[%s0 + $0x138] sm:$0xff]
  %v55 = vld [vmem:[%s0 + $0x140] sm:$0xff]
  %v56 = vld [vmem:[%s0 + $0x148] sm:$0xff]
  %v57 = vld [vmem:[%s0 + $0x150] sm:$0xff]
  %v58 = vld [vmem:[%s0 + $0x158] sm:$0xff]
  %v59 = vld [vmem:[%s0 + $0x160] sm:$0xff]
  %v60 = vld [vmem:[%s0 + $0x168] sm:$0xff]
  %v61 = vld [vmem:[%s0 + $0x170] sm:$0xff]
  %v62 = vld [vmem:[%s0 + $0x178] sm:$0xff]
  %v63 = vld [vmem:[%s0 + $0x180] sm:$0xff]
  %v64 = vld [vmem:[%s0 + $0x188] sm:$0xff]
  %v65 = vld [vmem:[%s0 + $0x190] sm:$0xff]
  %v66 = vld [vmem:[%s0 + $0x198] sm:$0xff]
  %v67 = vld [vmem:[%s0 + $0x1a0] sm:$0xff]
  %v68 = vld [vmem:[%s0 + $0x1a8] sm:$0xff]
  %v69 = vld [vmem:[%s0 + $0x1b0] sm:$0xff]
  %v70 = vld [vmem:[%s0 + $0x1b8] sm:$0xff]
  %v71 = vld [vmem:[%s0 + $0x1c0] sm:$0xff]
  %v72 = vld [vmem:[%s0 + $0x1c8] sm:$0xff]
  %v73 = vld [vmem:[%s0 + $0x1d0] sm:$0xff]
  %v74 = vld [vmem:[%s0 + $0x1d8] sm:$0xff]
  %v75 = vld [vmem:[%s0 + $0x1e0] sm:$0xff]
  %v76 = vld [vmem:[%s0 + $0x1e8] sm:$0xff]
  %v77 = vld [vmem:[%s0 + $0x1f0] sm:$0xff]
  %v78 = vld [vmem:[%s0 + $0x1f8] sm:$0xff]
  %v79 = vpack.c.bf16 %v17, %v15
  %v80 = vpack.c.bf16 %v18, %v16
  %v81 = vpack.c.bf16 %v21, %v19
  %v82 = vpack.c.bf16 %v22, %v20
  %v83 = vpack.c.bf16 %v25, %v23
  %v84 = vpack.c.bf16 %v26, %v24
  %v85 = vpack.c.bf16 %v29, %v27
  %v86 = vpack.c.bf16 %v30, %v28
  %v87 = vpack.c.bf16 %v33, %v31
  %v88 = vpack.c.bf16 %v34, %v32
  %v89 = vpack.c.bf16 %v37, %v35
  %v90 = vpack.c.bf16 %v38, %v36
  %v91 = vpack.c.bf16 %v41, %v39
  %v92 = vpack.c.bf16 %v42, %v40
  %v93 = vpack.c.bf16 %v45, %v43
  %v94 = vpack.c.bf16 %v46, %v44
  %v95 = vpack.c.bf16 %v49, %v47
  %v96 = vpack.c.bf16 %v50, %v48
  %v97 = vpack.c.bf16 %v53, %v51
  %v98 = vpack.c.bf16 %v54, %v52
  %v99 = vpack.c.bf16 %v57, %v55
  %v100 = vpack.c.bf16 %v58, %v56
  %v101 = vpack.c.bf16 %v61, %v59
  %v102 = vpack.c.bf16 %v62, %v60
  %v103 = vpack.c.bf16 %v65, %v63
  %v104 = vpack.c.bf16 %v66, %v64
  %v105 = vpack.c.bf16 %v69, %v67
  %v106 = vpack.c.bf16 %v70, %v68
  %v107 = vpack.c.bf16 %v73, %v71
  %v108 = vpack.c.bf16 %v74, %v72
  %v109 = vpack.c.bf16 %v77, %v75
  %v110 = vpack.c.bf16 %v78, %v76
  %v111 = vld [vmem:[%s1] sm:$0xf]
  %v112 = vld [vmem:[%s1 + $0x4] sm:$0xf]
  %v113 = vld [vmem:[%s1 + $0x8] sm:$0xf]
  %v114 = vld [vmem:[%s1 + $0xc] sm:$0xf]
  %v115 = vld [vmem:[%s1 + $0x10] sm:$0xf]
  %v116 = vld [vmem:[%s1 + $0x14] sm:$0xf]
  %v117 = vld [vmem:[%s1 + $0x18] sm:$0xf]
  %v118 = vld [vmem:[%s1 + $0x1c] sm:$0xf]
  %v119 = vld [vmem:[%s1 + $0x20] sm:$0xf]
  %v120 = vld [vmem:[%s1 + $0x24] sm:$0xf]
  %v121 = vld [vmem:[%s1 + $0x28] sm:$0xf]
  %v122 = vld [vmem:[%s1 + $0x2c] sm:$0xf]
  %v123 = vld [vmem:[%s1 + $0x30] sm:$0xf]
  %v124 = vld [vmem:[%s1 + $0x34] sm:$0xf]
  %v125 = vld [vmem:[%s1 + $0x38] sm:$0xf]
  %v126 = vld [vmem:[%s1 + $0x3c] sm:$0xf]
  %v127 = vld [vmem:[%s1 + $0x40] sm:$0xf]
  %v128 = vld [vmem:[%s1 + $0x44] sm:$0xf]
  %v129 = vld [vmem:[%s1 + $0x48] sm:$0xf]
  %v130 = vld [vmem:[%s1 + $0x4c] sm:$0xf]
  %v131 = vld [vmem:[%s1 + $0x50] sm:$0xf]
  %v132 = vld [vmem:[%s1 + $0x54] sm:$0xf]
  %v133 = vld [vmem:[%s1 + $0x58] sm:$0xf]
  %v134 = vld [vmem:[%s1 + $0x5c] sm:$0xf]
  %v135 = vld [vmem:[%s2] sm:$0x1]
  %v137 = vperm.slane %v135, 0
  %v163 = vunpack.c.l.b16 %v111
  %v164 = vunpack.c.l.b16 %v112
  %v165 = vunpack.c.l.b16 %v113
  %v166 = vunpack.c.l.b16 %v114
  %v167 = vunpack.c.l.b16 %v115
  %v168 = vunpack.c.l.b16 %v116
  %v169 = vunpack.c.l.b16 %v117
  %v170 = vunpack.c.l.b16 %v118
  %v171 = vunpack.c.l.b16 %v119
  %v172 = vunpack.c.l.b16 %v120
  %v173 = vunpack.c.l.b16 %v121
  %v174 = vunpack.c.l.b16 %v122
  %v175 = vunpack.c.l.b16 %v123
  %v176 = vunpack.c.l.b16 %v124
  %v177 = vunpack.c.l.b16 %v125
  %v178 = vunpack.c.l.b16 %v126
  %v179 = vunpack.c.l.b16 %v127
  %v180 = vunpack.c.l.b16 %v128
  %v181 = vunpack.c.l.b16 %v129
  %v182 = vunpack.c.l.b16 %v130
  %v183 = vunpack.c.l.b16 %v131
  %v184 = vunpack.c.l.b16 %v132
  %v185 = vunpack.c.l.b16 %v133
  %v186 = vunpack.c.l.b16 %v134
  %v187 = vpack.c.b16 %v164, %v163
  %v188 = vpack.c.b16 %v166, %v165
  %v189 = vpack.c.b16 %v168, %v167
  %v190 = vpack.c.b16 %v170, %v169
  %v191 = vpack.c.b16 %v172, %v171
  %v192 = vpack.c.b16 %v174, %v173
  %v193 = vpack.c.b16 %v176, %v175
  %v194 = vpack.c.b16 %v178, %v177
  %v195 = vpack.c.b16 %v180, %v179
  %v196 = vpack.c.b16 %v182, %v181
  %v197 = vpack.c.b16 %v184, %v183
  %v198 = vpack.c.b16 %v186, %v185
  %vm211 = vcmask 523264
  %v213 = vsel %vm211, %v80, 0
  %v216 = vsel %vm211, %v82, 0
  %v219 = vsel %vm211, %v84, 0
  %v222 = vsel %vm211, %v86, 0
  %v225 = vsel %vm211, %v88, 0
  %v228 = vsel %vm211, %v90, 0
  %v231 = vsel %vm211, %v92, 0
  %v234 = vsel %vm211, %v94, 0
  %v237 = vsel %vm211, %v96, 0
  %v240 = vsel %vm211, %v98, 0
  %v243 = vsel %vm211, %v100, 0
  %v246 = vsel %vm211, %v102, 0
  %v249 = vsel %vm211, %v104, 0
  %v252 = vsel %vm211, %v106, 0
  %v255 = vsel %vm211, %v108, 0
  %v258 = vsel %vm211, %v110, 0
  %260 = vmatpush.bf16.msra.mxu0 %v194
  %261 = vmatpush.bf16.msra.mxu0 %v193
  %262 = vmatpush.bf16.msra.mxu0 %v192
  %263 = vmatpush.bf16.msra.mxu0 %v191
  %264 = vmatpush.bf16.msra.mxu0 %v190
  %265 = vmatpush.bf16.msra.mxu0 %v189
  %266 = vmatpush.bf16.msra.mxu0 %v188
  %267 = vmatpush.bf16.msra.mxu0 %v187
  %268 = vmatmul.bf16.gmra.mxu0 %v79
  %v269 = vpop.f32.mrf.mxu0
  %v270 = vadd.f32 %v137, %v269
  %v271 = vpop.f32.mrf.mxu0
  %v272 = vadd.f32 %v137, %v271
  %273 = vmatmul.bf16.gmra.mxu0 %v81
  %v274 = vpop.f32.mrf.mxu0
  %v275 = vadd.f32 %v137, %v274
  %v276 = vpop.f32.mrf.mxu0
  %v277 = vadd.f32 %v137, %v276
  %278 = vmatmul.bf16.gmra.mxu0 %v83
  %v279 = vpop.f32.mrf.mxu0
  %v280 = vadd.f32 %v137, %v279
  %v281 = vpop.f32.mrf.mxu0
  %v282 = vadd.f32 %v137, %v281
  %283 = vmatmul.bf16.gmra.mxu0 %v85
  %v284 = vpop.f32.mrf.mxu0
  %v285 = vadd.f32 %v137, %v284
  %v286 = vpop.f32.mrf.mxu0
  %v287 = vadd.f32 %v137, %v286
  %288 = vmatmul.bf16.gmra.mxu0 %v87
  %v289 = vpop.f32.mrf.mxu0
  %v290 = vadd.f32 %v137, %v289
  %v291 = vpop.f32.mrf.mxu0
  %v292 = vadd.f32 %v137, %v291
  %293 = vmatmul.bf16.gmra.mxu0 %v89
  %v294 = vpop.f32.mrf.mxu0
  %v295 = vadd.f32 %v137, %v294
  %v296 = vpop.f32.mrf.mxu0
  %v297 = vadd.f32 %v137, %v296
  %298 = vmatmul.bf16.gmra.mxu0 %v91
  %v299 = vpop.f32.mrf.mxu0
  %v300 = vadd.f32 %v137, %v299
  %v301 = vpop.f32.mrf.mxu0
  %v302 = vadd.f32 %v137, %v301
  %303 = vmatmul.bf16.gmra.mxu0 %v93
  %v304 = vpop.f32.mrf.mxu0
  %v305 = vadd.f32 %v137, %v304
  %v306 = vpop.f32.mrf.mxu0
  %v307 = vadd.f32 %v137, %v306
  %308 = vmatmul.bf16.gmra.mxu0 %v95
  %v309 = vpop.f32.mrf.mxu0
  %v310 = vadd.f32 %v137, %v309
  %v311 = vpop.f32.mrf.mxu0
  %v312 = vadd.f32 %v137, %v311
  %313 = vmatmul.bf16.gmra.mxu0 %v97
  %v314 = vpop.f32.mrf.mxu0
  %v315 = vadd.f32 %v137, %v314
  %v316 = vpop.f32.mrf.mxu0
  %v317 = vadd.f32 %v137, %v316
  %318 = vmatmul.bf16.gmra.mxu0 %v99
  %v319 = vpop.f32.mrf.mxu0
  %v320 = vadd.f32 %v137, %v319
  %v321 = vpop.f32.mrf.mxu0
  %v322 = vadd.f32 %v137, %v321
  %323 = vmatmul.bf16.gmra.mxu0 %v101
  %v324 = vpop.f32.mrf.mxu0
  %v325 = vadd.f32 %v137, %v324
  %v326 = vpop.f32.mrf.mxu0
  %v327 = vadd.f32 %v137, %v326
  %328 = vmatmul.bf16.gmra.mxu0 %v103
  %v329 = vpop.f32.mrf.mxu0
  %v330 = vadd.f32 %v137, %v329
  %v331 = vpop.f32.mrf.mxu0
  %v332 = vadd.f32 %v137, %v331
  %333 = vmatmul.bf16.gmra.mxu0 %v105
  %v334 = vpop.f32.mrf.mxu0
  %v335 = vadd.f32 %v137, %v334
  %v336 = vpop.f32.mrf.mxu0
  %v337 = vadd.f32 %v137, %v336
  %338 = vmatmul.bf16.gmra.mxu0 %v107
  %v339 = vpop.f32.mrf.mxu0
  %v340 = vadd.f32 %v137, %v339
  %v341 = vpop.f32.mrf.mxu0
  %v342 = vadd.f32 %v137, %v341
  %343 = vmatmul.bf16.gmra.mxu0 %v109
  %v344 = vpop.f32.mrf.mxu0
  %v345 = vadd.f32 %v137, %v344
  %v346 = vpop.f32.mrf.mxu0
  %v347 = vadd.f32 %v137, %v346
  %348 = vdwg.mxu0
  %349 = vmatpush.bf16.msra.mxu0 0
  %350 = vmatpush.bf16.msra.mxu0 0
  %351 = vmatpush.bf16.msra.mxu0 0
  %352 = vmatpush.bf16.msra.mxu0 0
  %353 = vmatpush.bf16.msra.mxu0 %v198
  %354 = vmatpush.bf16.msra.mxu0 %v197
  %355 = vmatpush.bf16.msra.mxu0 %v196
  %356 = vmatpush.bf16.msra.mxu0 %v195
  %357 = vmatmul.bf16.gmra.mxu0 %v213
  %v358 = vpop.f32.mrf.mxu0
  %v359 = vadd.f32 %v270, %v358
  %v360 = vpop.f32.mrf.mxu0
  %v361 = vadd.f32 %v272, %v360
  %362 = vmatmul.bf16.gmra.mxu0 %v216
  %v363 = vpop.f32.mrf.mxu0
  %v364 = vadd.f32 %v275, %v363
  %v365 = vpop.f32.mrf.mxu0
  %v366 = vadd.f32 %v277, %v365
  %367 = vmatmul.bf16.gmra.mxu0 %v219
  %v368 = vpop.f32.mrf.mxu0
  %v369 = vadd.f32 %v280, %v368
  %v370 = vpop.f32.mrf.mxu0
  %v371 = vadd.f32 %v282, %v370
  %372 = vmatmul.bf16.gmra.mxu0 %v222
  %v373 = vpop.f32.mrf.mxu0
  %v374 = vadd.f32 %v285, %v373
  %v375 = vpop.f32.mrf.mxu0
  %v376 = vadd.f32 %v287, %v375
  %377 = vmatmul.bf16.gmra.mxu0 %v225
  %v378 = vpop.f32.mrf.mxu0
  %v379 = vadd.f32 %v290, %v378
  %v380 = vpop.f32.mrf.mxu0
  %v381 = vadd.f32 %v292, %v380
  %382 = vmatmul.bf16.gmra.mxu0 %v228
  %v383 = vpop.f32.mrf.mxu0
  %v384 = vadd.f32 %v295, %v383
  %v385 = vpop.f32.mrf.mxu0
  %v386 = vadd.f32 %v297, %v385
  %387 = vmatmul.bf16.gmra.mxu0 %v231
  %v388 = vpop.f32.mrf.mxu0
  %v389 = vadd.f32 %v300, %v388
  %v390 = vpop.f32.mrf.mxu0
  %v391 = vadd.f32 %v302, %v390
  %392 = vmatmul.bf16.gmra.mxu0 %v234
  %v393 = vpop.f32.mrf.mxu0
  %v394 = vadd.f32 %v305, %v393
  %v395 = vpop.f32.mrf.mxu0
  %v396 = vadd.f32 %v307, %v395
  %397 = vmatmul.bf16.gmra.mxu0 %v237
  %v398 = vpop.f32.mrf.mxu0
  %v399 = vadd.f32 %v310, %v398
  %v400 = vpop.f32.mrf.mxu0
  %v401 = vadd.f32 %v312, %v400
  %402 = vmatmul.bf16.gmra.mxu0 %v240
  %v403 = vpop.f32.mrf.mxu0
  %v404 = vadd.f32 %v315, %v403
  %v405 = vpop.f32.mrf.mxu0
  %v406 = vadd.f32 %v317, %v405
  %407 = vmatmul.bf16.gmra.mxu0 %v243
  %v408 = vpop.f32.mrf.mxu0
  %v409 = vadd.f32 %v320, %v408
  %v410 = vpop.f32.mrf.mxu0
  %v411 = vadd.f32 %v322, %v410
  %412 = vmatmul.bf16.gmra.mxu0 %v246
  %v413 = vpop.f32.mrf.mxu0
  %v414 = vadd.f32 %v325, %v413
  %v415 = vpop.f32.mrf.mxu0
  %v416 = vadd.f32 %v327, %v415
  %417 = vmatmul.bf16.gmra.mxu0 %v249
  %v418 = vpop.f32.mrf.mxu0
  %v419 = vadd.f32 %v330, %v418
  %v420 = vpop.f32.mrf.mxu0
  %v421 = vadd.f32 %v332, %v420
  %422 = vmatmul.bf16.gmra.mxu0 %v252
  %v423 = vpop.f32.mrf.mxu0
  %v424 = vadd.f32 %v335, %v423
  %v425 = vpop.f32.mrf.mxu0
  %v426 = vadd.f32 %v337, %v425
  %427 = vmatmul.bf16.gmra.mxu0 %v255
  %v428 = vpop.f32.mrf.mxu0
  %v429 = vadd.f32 %v340, %v428
  %v430 = vpop.f32.mrf.mxu0
  %v431 = vadd.f32 %v342, %v430
  %432 = vmatmul.bf16.gmra.mxu0 %v258
  %v433 = vpop.f32.mrf.mxu0
  %v434 = vadd.f32 %v345, %v433
  %v435 = vpop.f32.mrf.mxu0
  %v436 = vadd.f32 %v347, %v435
  %437 = vdwg.mxu0
  %vm438 = vcmask 261120
  %439 = vst.msk [vmem:[%s3] sm:$0xff] %vm438, %v359
  %440 = vst.msk [vmem:[%s3 + $0x8] sm:$0xff] %vm438, %v361
  %441 = vst.msk [vmem:[%s3 + $0x10] sm:$0xff] %vm438, %v364
  %442 = vst.msk [vmem:[%s3 + $0x18] sm:$0xff] %vm438, %v366
  %443 = vst.msk [vmem:[%s3 + $0x20] sm:$0xff] %vm438, %v369
  %444 = vst.msk [vmem:[%s3 + $0x28] sm:$0xff] %vm438, %v371
  %445 = vst.msk [vmem:[%s3 + $0x30] sm:$0xff] %vm438, %v374
  %446 = vst.msk [vmem:[%s3 + $0x38] sm:$0xff] %vm438, %v376
  %447 = vst.msk [vmem:[%s3 + $0x40] sm:$0xff] %vm438, %v379
  %448 = vst.msk [vmem:[%s3 + $0x48] sm:$0xff] %vm438, %v381
  %449 = vst.msk [vmem:[%s3 + $0x50] sm:$0xff] %vm438, %v384
  %450 = vst.msk [vmem:[%s3 + $0x58] sm:$0xff] %vm438, %v386
  %451 = vst.msk [vmem:[%s3 + $0x60] sm:$0xff] %vm438, %v389
  %452 = vst.msk [vmem:[%s3 + $0x68] sm:$0xff] %vm438, %v391
  %453 = vst.msk [vmem:[%s3 + $0x70] sm:$0xff] %vm438, %v394
  %454 = vst.msk [vmem:[%s3 + $0x78] sm:$0xff] %vm438, %v396
  %455 = vst.msk [vmem:[%s3 + $0x80] sm:$0xff] %vm438, %v399
  %456 = vst.msk [vmem:[%s3 + $0x88] sm:$0xff] %vm438, %v401
  %457 = vst.msk [vmem:[%s3 + $0x90] sm:$0xff] %vm438, %v404
  %458 = vst.msk [vmem:[%s3 + $0x98] sm:$0xff] %vm438, %v406
  %459 = vst.msk [vmem:[%s3 + $0xa0] sm:$0xff] %vm438, %v409
  %460 = vst.msk [vmem:[%s3 + $0xa8] sm:$0xff] %vm438, %v411
  %461 = vst.msk [vmem:[%s3 + $0xb0] sm:$0xff] %vm438, %v414
  %462 = vst.msk [vmem:[%s3 + $0xb8] sm:$0xff] %vm438, %v416
  %463 = vst.msk [vmem:[%s3 + $0xc0] sm:$0xff] %vm438, %v419
  %464 = vst.msk [vmem:[%s3 + $0xc8] sm:$0xff] %vm438, %v421
  %465 = vst.msk [vmem:[%s3 + $0xd0] sm:$0xff] %vm438, %v424
  %466 = vst.msk [vmem:[%s3 + $0xd8] sm:$0xff] %vm438, %v426
  %467 = vst.msk [vmem:[%s3 + $0xe0] sm:$0xff] %vm438, %v429
  %468 = vst.msk [vmem:[%s3 + $0xe8] sm:$0xff] %vm438, %v431
  %469 = vst.msk [vmem:[%s3 + $0xf0] sm:$0xff] %vm438, %v434
  %470 = vst.msk [vmem:[%s3 + $0xf8] sm:$0xff] %vm438, %v436
  // Predicated region
  $region14: #{tpu_custom_call.1} parent=0 // pred_check
    _
  $region15: #{tpu_custom_call.1} parent=0 // pred_check_branch
    %472 = sbr.rel (0) target = $region17
  $region16: #{tpu_custom_call.1} parent=0 // pred_region
    _
  $region17: #{tpu_custom_call.1} parent=0 // pred_fallthru
    _
  // Predicated region
  $region18: #{tpu_custom_call.1} parent=0 // pred_check
    _
  $region19: #{tpu_custom_call.1} parent=0 // pred_check_branch
    %474 = sbr.rel (0) target = $region21
  $region20: #{tpu_custom_call.1} parent=0 // pred_region
    _
  $region21: #{tpu_custom_call.1} parent=0 // pred_fallthru
    _

</llo_original>
